<compile_context>
chip_gen: v6e
topology: v6e:2x2x1
jax: 0.10.0
libtpu: 0.0.40
codegen_flags: <defaults>
</compile_context>

<pallas_src>
import jax
import jax.numpy as jnp
from jax.experimental import pallas as pl
from jax.experimental.pallas import tpu as pltpu


# ----------------------------- small helpers --------------------------------

def _sublane_multiple(dtype):
    # Sublane granularity of the second-to-last block dim: 8 (f32), 16 (bf16),
    # 32 (int8 / bool).
    return max(8, 32 // jnp.dtype(dtype).itemsize)


def _divisors(n):
    ds = set()
    i = 1
    while i * i <= n:
        if n % i == 0:
            ds.add(i)
            ds.add(n // i)
        i += 1
    return sorted(ds)


def _vmem_budget():
    """(per_input_tile_cap_bytes, vmem_limit_ceiling_bytes), generation-aware."""
    cap = None
    try:
        info = pltpu.get_tpu_info()
        cap = int(getattr(info, "vmem_capacity_bytes", 0)) or None
    except Exception:
        cap = None
    if cap is None:
        # Unknown generation: be conservative (assume v7x-like 64 MiB VMEM).
        return 4 << 20, 48 << 20
    if cap <= (80 << 20):
        # v7x-class: only 64 MiB VMEM/TC but ~2.5x HBM BW -> bigger tiles,
        # tighter scoped-VMEM ceiling (leave headroom, never request all 64).
        return 6 << 20, min(48 << 20, (cap * 3) // 4)
    # v5e / v6e: 128 MiB physical VMEM.
    return 4 << 20, min(96 << 20, (cap * 3) // 4)


def _choose_spatial_factorization(HW, N, itemsize, budget):
    """Pick (L, R) with L*R == HW.  The reshape (N,C,H,W)->(N,C,R,L) is a free
    contiguous view; prefer a lane-dense L (multiple of 128, else max lane fill)."""
    divs = _divisors(HW)
    m128 = [d for d in divs if d % 128 == 0]
    if m128:
        L = m128[0]          # smallest 128-multiple => most rows => flexible tiling
        return L, HW // L
    # No 128-aligned divisor: maximize vreg lane fill among divisors whose
    # minimal (one-row) block still fits the per-input tile budget.
    def fill(d):
        return d / ((-(-d // 128)) * 128)
    feasible = [d for d in divs if N * d * itemsize <= budget] or divs
    L = max(feasible, key=lambda d: (fill(d), d))
    return L, HW // L


# --------------------------------- kernel -----------------------------------

def _make_dice_kernel(*, needs_mask, total_rows, block_rows, tiles_per_split):
    def dice_kernel(keep_ref, o_ref, t_ref, inter_out, sums_out,
                    inter_acc, sum_acc):
        # keep_ref: SMEM channel-index table (consumed only by the index_maps).
        s = pl.program_id(2)

        @pl.when(s == 0)
        def _():
            inter_acc[...] = jnp.zeros_like(inter_acc)
            sum_acc[...] = jnp.zeros_like(sum_acc)

        # Blocks are (N, 1, TR, L) in the inputs' native dtype; cast in-kernel.
        o = o_ref[...].astype(jnp.float32)
        t = t_ref[...].astype(jnp.float32)
        prod = o * t
        both = o + t                    # sum(o + t) == sum(o) + sum(t)

        if needs_mask:
            # cdiv tail tile: zero out rows past the true spatial extent.
            tile = pl.program_id(0) * tiles_per_split + s
            valid = total_rows - tile * block_rows
            rows = jax.lax.broadcasted_iota(jnp.int32, (1, 1) + o.shape[2:], 2)
            m = rows < valid
            prod = jnp.where(m, prod, 0.0)   # select: garbage in pad can't leak
            both = jnp.where(m, both, 0.0)

        # Collapse batch + squeezed channel dim, then sublanes; keep (1, L)
        # lane partials so the hot loop has no cross-lane reduce.
        inter_acc[...] += jnp.sum(jnp.sum(prod, axis=(0, 1)), axis=0, keepdims=True)
        sum_acc[...] += jnp.sum(jnp.sum(both, axis=(0, 1)), axis=0, keepdims=True)

        @pl.when(s == pl.num_programs(2) - 1)
        def _():
            inter = jnp.sum(inter_acc[...])
            total = jnp.sum(sum_acc[...])
            inter_out[...] = jnp.broadcast_to(inter, inter_out.shape).astype(jnp.float32)
            sums_out[...] = jnp.broadcast_to(total, sums_out.shape).astype(jnp.float32)

    return dice_kernel


# -------------------------------- wrapper ------------------------------------

def soft_dice_loss(output, target, *, ignore_index=None, smooth=1.0,
                   reduction="mean", max_rows_per_block=None):
    assert output.shape == target.shape
    N, C, H, W = output.shape
    HW = H * W

    keep_idx = [i for i in range(C) if ignore_index is None or i != ignore_index]
    n_count = len(keep_idx)
    assert n_count > 0
    keep = jnp.asarray(keep_idx, dtype=jnp.int32)

    item_o = jnp.dtype(output.dtype).itemsize
    item_t = jnp.dtype(target.dtype).itemsize
    max_item = max(item_o, item_t)
    sub = max(_sublane_multiple(output.dtype), _sublane_multiple(target.dtype))

    per_input_cap, vmem_ceiling = _vmem_budget()

    # Free, contiguous reshape only (no transpose, no dtype copy in HBM).
    L, R = _choose_spatial_factorization(HW, N, max_item, per_input_cap)
    o = output.reshape(N, C, R, L)
    t = target.reshape(N, C, R, L)

    # Row-tile selection: multiple of the sublane granularity, sized so one
    # input tile is ~per_input_cap bytes.  If it doesn't divide R exactly we
    # use a cdiv grid + in-kernel tail mask (no giant-fallback-block anymore).
    cap_rows = max(sub, (per_input_cap // (N * L * max_item)) // sub * sub)
    if max_rows_per_block is not None:
        cap_rows = min(cap_rows, max(sub, (int(max_rows_per_block) // sub) * sub))

    if R <= cap_rows:
        TR, n_s_total, needs_mask = R, 1, False
    else:
        TR = min(cap_rows, (R // sub) * sub)
        d = TR
        while d >= max(sub, TR // 2):    # prefer a nearby exact divisor (no mask)
            if R % d == 0:
                TR = d
                break
            d -= sub
        n_s_total = -(-R // TR)          # cdiv
        needs_mask = (R % TR) != 0

    # v7x has 2 TensorCores: when the spatial tile count is even, split the
    # reduction into 2 "parallel" halves so both TCs get work even for tiny
    # kept-channel counts.  (Odd tile counts simply use a single split.)
    n_split = 2 if (n_s_total >= 2 and n_s_total % 2 == 0) else 1
    n_s_per = n_s_total // n_split

    blk_bytes = N * TR * L * (item_o + item_t)
    vmem_limit = int(min(max(2 * blk_bytes + (4 << 20), 16 << 20), vmem_ceiling))

    kernel = _make_dice_kernel(needs_mask=needs_mask, total_rows=R,
                               block_rows=TR, tiles_per_split=n_s_per)

    in_map = lambda p, c, s, keep: (0, keep[c], p * n_s_per + s, 0)
    out_map = lambda p, c, s, keep: (p, c, 0, 0)

    inter_pc, sums_pc = pl.pallas_call(
        kernel,
        out_shape=(jax.ShapeDtypeStruct((n_split, n_count, 1, 128), jnp.float32),
                   jax.ShapeDtypeStruct((n_split, n_count, 1, 128), jnp.float32)),
        grid_spec=pltpu.PrefetchScalarGridSpec(
            num_scalar_prefetch=1,
            grid=(n_split, n_count, n_s_per),
            in_specs=[
                pl.BlockSpec((N, 1, TR, L), in_map),
                pl.BlockSpec((N, 1, TR, L), in_map),
            ],
            out_specs=[
                pl.BlockSpec((1, 1, 1, 128), out_map),
                pl.BlockSpec((1, 1, 1, 128), out_map),
            ],
            scratch_shapes=[pltpu.VMEM((1, L), jnp.float32),
                            pltpu.VMEM((1, L), jnp.float32)],
        ),
        compiler_params=pltpu.CompilerParams(
            dimension_semantics=("parallel", "parallel", "arbitrary"),
            vmem_limit_bytes=vmem_limit,
        ),
    )(keep, o, t)

    # Tiny final combine (2 * n_split * n_count scalars) in plain JAX.
    inter_c = jnp.sum(inter_pc[:, :, 0, 0], axis=0)     # (n_count,)
    union_c = jnp.sum(sums_pc[:, :, 0, 0], axis=0)      # (n_count,)
    loss_c = 1.0 - (2.0 * inter_c + float(smooth)) / (union_c + float(smooth))
    loss = jnp.sum(loss_c)
    if reduction == "mean":
        loss = loss / n_count
    return loss


# --------------------------- pure-JAX reference ------------------------------

def soft_dice_loss_ref(output, target, *, ignore_index=None, smooth=1.0,
                       reduction="mean"):
    N, C = output.shape[0], output.shape[1]
    loss = 0.0
    n_count = 0
    for i in range(C):
        if ignore_index is not None and i == ignore_index:
            continue
        os = output[:, i].reshape(N, -1).astype(jnp.float32)
        ts = target[:, i].reshape(N, -1).astype(jnp.float32)
        inter = jnp.sum(os * ts)
        union = jnp.sum(os) + jnp.sum(ts)
        loss = loss + (1.0 - (2.0 * inter + smooth) / (union + smooth))
        n_count += 1
    if reduction == "mean":
        loss = loss / n_count
    return loss


# ----------------------------------- main ------------------------------------

if __name__ == "__main__":
    key = jax.random.PRNGKey(0)
    ks = jax.random.split(key, 8)

    # Case 1: default (no ignore_index), mean reduction, 128-aligned, single tile.
    N, C, H, W = 2, 4, 16, 16
    out1 = jax.nn.sigmoid(jax.random.normal(ks[0], (N, C, H, W), dtype=jnp.float32))
    tgt1 = (jax.random.uniform(ks[1], (N, C, H, W)) > 0.5).astype(jnp.float32)
    l1 = jax.block_until_ready(soft_dice_loss(out1, tgt1, smooth=1.0, reduction="mean"))
    r1 = soft_dice_loss_ref(out1, tgt1, smooth=1.0, reduction="mean")
    assert jnp.allclose(l1, r1, rtol=1e-4, atol=1e-5), (l1, r1)

    # Case 2: ignore_index + multi-tile spatial reduction + 2-way split path.
    N2, C2, H2, W2 = 2, 3, 64, 64
    out2 = jax.nn.sigmoid(jax.random.normal(ks[2], (N2, C2, H2, W2), dtype=jnp.float32))
    tgt2 = (jax.random.uniform(ks[3], (N2, C2, H2, W2)) > 0.5).astype(jnp.float32)
    l2 = jax.block_until_ready(
        soft_dice_loss(out2, tgt2, ignore_index=1, smooth=1.0, reduction="mean",
                       max_rows_per_block=8))
    r2 = soft_dice_loss_ref(out2, tgt2, ignore_index=1, smooth=1.0, reduction="mean")
    assert jnp.allclose(l2, r2, rtol=1e-4, atol=1e-5), (l2, r2)

    # Case 3: cdiv grid with masked tail tile (R=18, TR=8), sum reduction.
    N3, C3, H3, W3 = 2, 2, 48, 48
    out3 = jax.nn.sigmoid(jax.random.normal(ks[4], (N3, C3, H3, W3), dtype=jnp.float32))
    tgt3 = (jax.random.uniform(ks[5], (N3, C3, H3, W3)) > 0.5).astype(jnp.float32)
    l3 = jax.block_until_ready(
        soft_dice_loss(out3, tgt3, smooth=1.0, reduction="sum", max_rows_per_block=8))
    r3 = soft_dice_loss_ref(out3, tgt3, smooth=1.0, reduction="sum")
    assert jnp.allclose(l3, r3, rtol=1e-4, atol=1e-5), (l3, r3)

    # Case 4: non-128-aligned H*W (lane-dense fallback) + bf16 output dtype.
    N4, C4, H4, W4 = 2, 3, 18, 20
    out4 = jax.nn.sigmoid(
        jax.random.normal(ks[6], (N4, C4, H4, W4), dtype=jnp.float32)).astype(jnp.bfloat16)
    tgt4 = (jax.random.uniform(ks[7], (N4, C4, H4, W4)) > 0.5).astype(jnp.float32)
    l4 = jax.block_until_ready(soft_dice_loss(out4, tgt4, smooth=1.0, reduction="mean"))
    r4 = soft_dice_loss_ref(out4, tgt4, smooth=1.0, reduction="mean")
    assert jnp.allclose(l4, r4, rtol=1e-4, atol=1e-4), (l4, r4)

    print("KERNEL_OK")
</pallas_src>

<mosaic_0001>
module attributes {stable_mosaic.version = 11 : i64} {
  func.func @dice_kernel(%arg0: i32, %arg1: i32, %arg2: i32, %arg3: memref<4xi32, #tpu.memory_space<smem>>, %arg4: memref<2x1x2x128xf32, #tpu.memory_space<vmem>>, %arg5: memref<2x1x2x128xf32, #tpu.memory_space<vmem>>, %arg6: memref<1x1x1x128xf32, #tpu.memory_space<vmem>>, %arg7: memref<1x1x1x128xf32, #tpu.memory_space<vmem>>, %arg8: memref<1x128xf32, #tpu.memory_space<vmem>>, %arg9: memref<1x128xf32, #tpu.memory_space<vmem>>) attributes {dimension_semantics = [#tpu.dimension_semantics<parallel>, #tpu.dimension_semantics<parallel>, #tpu.dimension_semantics<arbitrary>], iteration_bounds = array<i64: 1, 4, 1>, scalar_prefetch = 1 : i64, scratch_operands = 2 : i64, tpu.core_type = #tpu.core_type<tc>, window_params = [{transform_indices = @transform_0, window_bounds = array<i64: 2, 1, 2, 128>}, {transform_indices = @transform_1, window_bounds = array<i64: 2, 1, 2, 128>}, {transform_indices = @transform_2, window_bounds = array<i64: 1, 1, 1, 128>}, {transform_indices = @transform_3, window_bounds = array<i64: 1, 1, 1, 128>}]} {
    %c0_i32 = arith.constant 0 : i32
    %0 = arith.cmpi eq, %arg2, %c0_i32 : i32
    %1 = arith.extui %0 : i1 to i32
    %c0_i32_0 = arith.constant 0 : i32
    %2 = arith.cmpi ne, %1, %c0_i32_0 : i32
    scf.if %2 {
      %cst_21 = arith.constant 0.000000e+00 : f32
      %22 = vector.broadcast %cst_21 : f32 to vector<1x128xf32>
      %c0_22 = arith.constant 0 : index
      %c0_23 = arith.constant 0 : index
      %23 = vector.load %arg8[%c0_22, %c0_23] : memref<1x128xf32, #tpu.memory_space<vmem>>, vector<1x128xf32>
      tpu.vector_store %arg8[%c0_22, %c0_23], %22 {strides = array<i32>} : memref<1x128xf32, #tpu.memory_space<vmem>>, vector<1x128xf32>,
      %cst_24 = arith.constant 0.000000e+00 : f32
      %24 = vector.broadcast %cst_24 : f32 to vector<1x128xf32>
      %c0_25 = arith.constant 0 : index
      %c0_26 = arith.constant 0 : index
      %25 = vector.load %arg9[%c0_25, %c0_26] : memref<1x128xf32, #tpu.memory_space<vmem>>, vector<1x128xf32>
      tpu.vector_store %arg9[%c0_25, %c0_26], %24 {strides = array<i32>} : memref<1x128xf32, #tpu.memory_space<vmem>>, vector<1x128xf32>,
    } else {
    }
    %c0 = arith.constant 0 : index
    %c0_1 = arith.constant 0 : index
    %c0_2 = arith.constant 0 : index
    %c0_3 = arith.constant 0 : index
    %3 = vector.load %arg4[%c0, %c0_1, %c0_2, %c0_3] : memref<2x1x2x128xf32, #tpu.memory_space<vmem>>, vector<2x1x2x128xf32>
    %c0_4 = arith.constant 0 : index
    %c0_5 = arith.constant 0 : index
    %c0_6 = arith.constant 0 : index
    %c0_7 = arith.constant 0 : index
    %4 = vector.load %arg5[%c0_4, %c0_5, %c0_6, %c0_7] : memref<2x1x2x128xf32, #tpu.memory_space<vmem>>, vector<2x1x2x128xf32>
    %5 = arith.mulf %3, %4 : vector<2x1x2x128xf32>
    %6 = arith.addf %3, %4 : vector<2x1x2x128xf32>
    %c0_8 = arith.constant 0 : index
    %c0_9 = arith.constant 0 : index
    %7 = vector.load %arg8[%c0_8, %c0_9] : memref<1x128xf32, #tpu.memory_space<vmem>>, vector<1x128xf32>
    %cst = arith.constant dense<0.000000e+00> : vector<2x128xf32>
    %8 = vector.multi_reduction <add>, %5, %cst [0, 1] : vector<2x1x2x128xf32> to vector<2x128xf32>
    %cst_10 = arith.constant dense<0.000000e+00> : vector<128xf32>
    %9 = vector.multi_reduction <add>, %8, %cst_10 [0] : vector<2x128xf32> to vector<128xf32>
    %10 = vector.shape_cast %9 : vector<128xf32> to vector<1x128xf32>
    %11 = arith.addf %7, %10 : vector<1x128xf32>
    %c0_11 = arith.constant 0 : index
    %c0_12 = arith.constant 0 : index
    %12 = vector.load %arg8[%c0_11, %c0_12] : memref<1x128xf32, #tpu.memory_space<vmem>>, vector<1x128xf32>
    tpu.vector_store %arg8[%c0_11, %c0_12], %11 {strides = array<i32>} : memref<1x128xf32, #tpu.memory_space<vmem>>, vector<1x128xf32>,
    %c0_13 = arith.constant 0 : index
    %c0_14 = arith.constant 0 : index
    %13 = vector.load %arg9[%c0_13, %c0_14] : memref<1x128xf32, #tpu.memory_space<vmem>>, vector<1x128xf32>
    %cst_15 = arith.constant dense<0.000000e+00> : vector<2x128xf32>
    %14 = vector.multi_reduction <add>, %6, %cst_15 [0, 1] : vector<2x1x2x128xf32> to vector<2x128xf32>
    %cst_16 = arith.constant dense<0.000000e+00> : vector<128xf32>
    %15 = vector.multi_reduction <add>, %14, %cst_16 [0] : vector<2x128xf32> to vector<128xf32>
    %16 = vector.shape_cast %15 : vector<128xf32> to vector<1x128xf32>
    %17 = arith.addf %13, %16 : vector<1x128xf32>
    %c0_17 = arith.constant 0 : index
    %c0_18 = arith.constant 0 : index
    %18 = vector.load %arg9[%c0_17, %c0_18] : memref<1x128xf32, #tpu.memory_space<vmem>>, vector<1x128xf32>
    tpu.vector_store %arg9[%c0_17, %c0_18], %17 {strides = array<i32>} : memref<1x128xf32, #tpu.memory_space<vmem>>, vector<1x128xf32>,
    %c0_i32_19 = arith.constant 0 : i32
    %19 = arith.cmpi eq, %arg2, %c0_i32_19 : i32
    %20 = arith.extui %19 : i1 to i32
    %c0_i32_20 = arith.constant 0 : i32
    %21 = arith.cmpi ne, %20, %c0_i32_20 : i32
    scf.if %21 {
      %c0_21 = arith.constant 0 : index
      %c0_22 = arith.constant 0 : index
      %22 = vector.load %arg8[%c0_21, %c0_22] : memref<1x128xf32, #tpu.memory_space<vmem>>, vector<1x128xf32>
      %23 = vector.shape_cast %22 : vector<1x128xf32> to vector<1x1x128xf32>
      %cst_23 = arith.constant dense<0.000000e+00> : vector<1xf32>
      %24 = vector.multi_reduction <add>, %23, %cst_23 [1, 2] : vector<1x1x128xf32> to vector<1xf32>
      %25 = vector.shape_cast %24 : vector<1xf32> to vector<1x1x1xf32>
      %26 = vector.extract %25[0, 0, 0] : f32 from vector<1x1x1xf32>
      %c0_24 = arith.constant 0 : index
      %c0_25 = arith.constant 0 : index
      %27 = vector.load %arg9[%c0_24, %c0_25] : memref<1x128xf32, #tpu.memory_space<vmem>>, vector<1x128xf32>
      %28 = vector.shape_cast %27 : vector<1x128xf32> to vector<1x1x128xf32>
      %cst_26 = arith.constant dense<0.000000e+00> : vector<1xf32>
      %29 = vector.multi_reduction <add>, %28, %cst_26 [1, 2] : vector<1x1x128xf32> to vector<1xf32>
      %30 = vector.shape_cast %29 : vector<1xf32> to vector<1x1x1xf32>
      %31 = vector.extract %30[0, 0, 0] : f32 from vector<1x1x1xf32>
      %32 = vector.broadcast %26 : f32 to vector<1x1x1x128xf32>
      %c0_27 = arith.constant 0 : index
      %c0_28 = arith.constant 0 : index
      %c0_29 = arith.constant 0 : index
      %c0_30 = arith.constant 0 : index
      %33 = vector.load %arg6[%c0_27, %c0_28, %c0_29, %c0_30] : memref<1x1x1x128xf32, #tpu.memory_space<vmem>>, vector<1x1x1x128xf32>
      tpu.vector_store %arg6[%c0_27, %c0_28, %c0_29, %c0_30], %32 {strides = array<i32>} : memref<1x1x1x128xf32, #tpu.memory_space<vmem>>, vector<1x1x1x128xf32>,
      %34 = vector.broadcast %31 : f32 to vector<1x1x1x128xf32>
      %c0_31 = arith.constant 0 : index
      %c0_32 = arith.constant 0 : index
      %c0_33 = arith.constant 0 : index
      %c0_34 = arith.constant 0 : index
      %35 = vector.load %arg7[%c0_31, %c0_32, %c0_33, %c0_34] : memref<1x1x1x128xf32, #tpu.memory_space<vmem>>, vector<1x1x1x128xf32>
      tpu.vector_store %arg7[%c0_31, %c0_32, %c0_33, %c0_34], %34 {strides = array<i32>} : memref<1x1x1x128xf32, #tpu.memory_space<vmem>>, vector<1x1x1x128xf32>,
    } else {
    }
    return
  }
  func.func @transform_0(%arg0: i32, %arg1: i32, %arg2: i32, %arg3: memref<4xi32, #tpu.memory_space<smem>>) -> (i32, i32, i32, i32) {
    %0 = arith.index_cast %arg1 : i32 to index
    %1 = memref.load %arg3[%0] : memref<4xi32, #tpu.memory_space<smem>>
    %c1_i32 = arith.constant 1 : i32
    %2 = arith.muli %arg0, %c1_i32 : i32
    %3 = arith.addi %2, %arg2 : i32
    %c0_i32 = arith.constant 0 : i32
    %c0_i32_0 = arith.constant 0 : i32
    %c0_i32_1 = arith.constant 0 : i32
    return %c0_i32, %1, %3, %c0_i32_0 : i32, i32, i32, i32
  }
  func.func @transform_1(%arg0: i32, %arg1: i32, %arg2: i32, %arg3: memref<4xi32, #tpu.memory_space<smem>>) -> (i32, i32, i32, i32) {
    %0 = arith.index_cast %arg1 : i32 to index
    %1 = memref.load %arg3[%0] : memref<4xi32, #tpu.memory_space<smem>>
    %c1_i32 = arith.constant 1 : i32
    %2 = arith.muli %arg0, %c1_i32 : i32
    %3 = arith.addi %2, %arg2 : i32
    %c0_i32 = arith.constant 0 : i32
    %c0_i32_0 = arith.constant 0 : i32
    %c0_i32_1 = arith.constant 0 : i32
    return %c0_i32, %1, %3, %c0_i32_0 : i32, i32, i32, i32
  }
  func.func @transform_2(%arg0: i32, %arg1: i32, %arg2: i32, %arg3: memref<4xi32, #tpu.memory_space<smem>>) -> (i32, i32, i32, i32) {
    %c0_i32 = arith.constant 0 : i32
    %c0_i32_0 = arith.constant 0 : i32
    %c0_i32_1 = arith.constant 0 : i32
    return %arg0, %arg1, %c0_i32, %c0_i32_0 : i32, i32, i32, i32
  }
  func.func @transform_3(%arg0: i32, %arg1: i32, %arg2: i32, %arg3: memref<4xi32, #tpu.memory_space<smem>>) -> (i32, i32, i32, i32) {
    %c0_i32 = arith.constant 0 : i32
    %c0_i32_0 = arith.constant 0 : i32
    %c0_i32_1 = arith.constant 0 : i32
    return %arg0, %arg1, %c0_i32, %c0_i32_0 : i32, i32, i32, i32
  }
}

</mosaic_0001>

<llo_original>
// kernel: tpu_custom_call.1
$region0: #{tpu_custom_call.1}
  #allocation0 [shape = 'u32[]', space=smem, size = 0x4, offset = 0x4, fixed_abs, tag = 'smem constant byte address 0x4 - core index']
  #allocation1 [shape = 'u32[144,128]{1,0:T(1,128)}', space=vmem, size = 0x12000, scoped, tag = 'internal scratch']
  #allocation2 [shape = 'f32[1,128]{1,0:T(1,128)}', space=vmem, size = 0x200, scoped, tag = 'scratch operand']
  #allocation3 [shape = 'f32[1,128]{1,0:T(1,128)}', space=vmem, size = 0x200, scoped, tag = 'scratch operand']
  #allocation4 [shape = 's32[1]{0}', space=sflag, size = 0x4, scoped, tag = 'scoped memory for tpu_custom_call.1']
  #allocation5 [shape = 'u8[512]{0}', space=smem, size = 0x200, scoped, tag = 'prefetched SMEM operand 0']
  %s0 = inlined_call_operand.hbm [shape: s32[4], index: 0, kind: input, shape index: {}]
  %s1 = inlined_call_operand.hbm [shape: f32[2,4,2,128], index: 1, kind: input, shape index: {}]
  %s2 = inlined_call_operand.hbm [shape: f32[2,4,2,128], index: 2, kind: input, shape index: {}]
  %s3 = inlined_call_operand.hbm [shape: f32[1,4,1,128], index: 3, kind: output, shape index: {0}]
  %s4 = inlined_call_operand.hbm [shape: f32[1,4,1,128], index: 4, kind: output, shape index: {1}]
  %5 = xla_tuple %s3, %s4
  %s6 = sld [smem:[#allocation0]]
  $region65: #{tpu_custom_call.1} parent=0
    _
  %s8 = ssub.s32 1, %s6
  %s9 = scalar_select 0, %s8, %s6
  %11 = dma.hbm_to_smem %s0, 16, [#allocation5], [#allocation4]
  %12 = dma.done [#allocation4], 16
  %13 = sfence
  $region1: #{tpu_custom_call.1} parent=0
    #allocation6 [shape = 'u8[4096]{0}', space=vmem, size = 0x1000, scoped, tag = 'input window, operand 1']
    #allocation7 [shape = 's32[2]{0}', space=sflag, size = 0x8, scoped, tag = 'scoped memory for tpu_custom_call.1']
    #allocation8 [shape = 's32[2]{0}', space=sflag, size = 0x8, scoped, tag = 'scoped memory for tpu_custom_call.1']
    #allocation9 [shape = 'u8[4096]{0}', space=vmem, size = 0x1000, scoped, tag = 'input window, operand 2']
    #allocation10 [shape = 's32[2]{0}', space=sflag, size = 0x8, scoped, tag = 'scoped memory for tpu_custom_call.1']
    #allocation11 [shape = 'u8[1024]{0}', space=vmem, size = 0x400, scoped, tag = 'output window, operand 0']
    #allocation12 [shape = 'u8[1024]{0}', space=vmem, size = 0x400, scoped, tag = 'output window, operand 1']
    #allocation13 [shape = 's32[2]{0}', space=sflag, size = 0x8, scoped, tag = 'scoped memory for tpu_custom_call.1']
    %14 = vsyncpa [#allocation7], 0
    %s15 = scalar_lea.sflag [#allocation7], 1
    %16 = vsyncpa %s15, 0
    %17 = vsyncpa [#allocation10], 0
    %s18 = scalar_lea.sflag [#allocation10], 1
    %19 = vsyncpa %s18, 0
    %20 = vsyncpa [#allocation8], 0
    %s21 = scalar_lea.sflag [#allocation8], 1
    %22 = vsyncpa %s21, 0
    %23 = vsyncpa [#allocation13], 0
    %s24 = scalar_lea.sflag [#allocation13], 1
    %25 = vsyncpa %s24, 0
    loop: start=0, step=1, limit=6
    $region2: #{tpu_custom_call.1} parent=1 // loop_pre_header
      _
    $region3: #{tpu_custom_call.1} parent=1 // loop_header
      %s27 = sphi 0, %s31
      %p28 = scmp.ge.s32.totalorder %s27, 6
      %s34 = sphi 0, %s53
      %s35 = sphi 0, %s49
      %s36 = sphi 0, %s45
      %s37 = sphi 0, %s34
      %s38 = sphi 0, %s35
      %s39 = sphi 0, %s36
      %s40 = sphi 0, %s37
      %s41 = sphi 0, %s38
      %s42 = sphi 0, %s39
      %s62 = sphi 0, %s64
      %s65 = sphi 0, %s62
      %s66 = sphi 0, %s65
      %s82 = sphi 0, %s66
      %s94 = sphi 0, %s96
      %s97 = sphi 0, %s94
      %s98 = sphi 0, %s97
      %s114 = sphi 0, %s98
      %s122 = sphi 0, %s124
      %s125 = sphi 0, %s122
      %s126 = sphi 0, %s125
      %s142 = sphi 0, %s126
      %s150 = sphi 0, %s152
      %s153 = sphi 0, %s150
      %s154 = sphi 0, %s153
      %s170 = sphi 0, %s154
    $region4: #{tpu_custom_call.1} parent=1 // loop_header_branch
      %30 = sbr.rel (%p28) target = $region8
    $region5: #{tpu_custom_call.1} parent=1 // loop_body
      %s32 = ssub.s32 %s27, 1
      %s33 = ssub.s32 %s27, 2
      %s43 = sadd.s32 1, %s36
      %p44 = scmp.ge.s32.totalorder %s43, 1
      %s45 = scalar_select %p44, 0, %s43
      %s46 = sadd.s32 1, %s35
      %s47 = scalar_select %p44, %s46, %s35
      %p48 = scmp.ge.s32.totalorder %s47, 4
      %s49 = scalar_select %p48, 0, %s47
      %s50 = sadd.s32 1, %s34
      %s51 = scalar_select %p48, %s50, %s34
      %p52 = scmp.ge.s32.totalorder %s51, 1
      %s53 = scalar_select %p52, 0, %s51
      %s54 = sld [smem:[#allocation5 + %s35]]
      %s55 = sadd.s32 %s34, %s36
      %s56 = sld [smem:[#allocation5 + %s49]]
      %s57 = sadd.s32 %s53, %s45
      %s58 = ssub.s32 %s54, %s56
      %s59 = ssub.s32 %s55, %s57
      %s60 = sor.u32 %s58, %s59
      %p61 = scmp.eq.s32.totalorder %s60, 0
      %s63 = sadd.s32 %s62, 1
      %s64 = scalar_select %p61, %s62, %s63
      %p67 = pneg %p61
      %p68 = scmp.eq.s32.totalorder %s27, 3
      %p69 = por %p67, %p68
      %p70 = scmp.ne.s32.totalorder %s62, %s65
      %p71 = scmp.eq.s32.totalorder %s27, 0
      %p72 = por %p70, %p71
      %p73 = scmp.ne.s32.totalorder %s62, %s65
      %p74 = scmp.eq.s32.totalorder %s32, 3
      %p75 = por %p73, %p74
      %p76 = scmp.ne.s32.totalorder %s65, %s66
      %p77 = scmp.eq.s32.totalorder %s32, 0
      %p78 = por %p76, %p77
      %p79 = scmp.ne.s32.totalorder %s65, %s66
      %p80 = scmp.eq.s32.totalorder %s33, 3
      %p81 = por %p79, %p80
      %p83 = scmp.ne.s32.totalorder %s66, %s82
      %p84 = scmp.eq.s32.totalorder %s33, 0
      %p85 = por %p83, %p84
      %s86 = sld [smem:[#allocation5 + %s35]]
      %s87 = sadd.s32 %s34, %s36
      %s88 = sld [smem:[#allocation5 + %s49]]
      %s89 = sadd.s32 %s53, %s45
      %s90 = ssub.s32 %s86, %s88
      %s91 = ssub.s32 %s87, %s89
      %s92 = sor.u32 %s90, %s91
      %p93 = scmp.eq.s32.totalorder %s92, 0
      %s95 = sadd.s32 %s94, 1
      %s96 = scalar_select %p93, %s94, %s95
      %p99 = pneg %p93
      %p100 = scmp.eq.s32.totalorder %s27, 3
      %p101 = por %p99, %p100
      %p102 = scmp.ne.s32.totalorder %s94, %s97
      %p103 = scmp.eq.s32.totalorder %s27, 0
      %p104 = por %p102, %p103
      %p105 = scmp.ne.s32.totalorder %s94, %s97
      %p106 = scmp.eq.s32.totalorder %s32, 3
      %p107 = por %p105, %p106
      %p108 = scmp.ne.s32.totalorder %s97, %s98
      %p109 = scmp.eq.s32.totalorder %s32, 0
      %p110 = por %p108, %p109
      %p111 = scmp.ne.s32.totalorder %s97, %s98
      %p112 = scmp.eq.s32.totalorder %s33, 3
      %p113 = por %p111, %p112
      %p115 = scmp.ne.s32.totalorder %s98, %s114
      %p116 = scmp.eq.s32.totalorder %s33, 0
      %p117 = por %p115, %p116
      %s118 = ssub.s32 %s34, %s53
      %s119 = ssub.s32 %s35, %s49
      %s120 = sor.u32 %s118, %s119
      %p121 = scmp.eq.s32.totalorder %s120, 0
      %s123 = sadd.s32 %s122, 1
      %s124 = scalar_select %p121, %s122, %s123
      %p127 = pneg %p121
      %p128 = scmp.eq.s32.totalorder %s27, 3
      %p129 = por %p127, %p128
      %p130 = scmp.ne.s32.totalorder %s122, %s125
      %p131 = scmp.eq.s32.totalorder %s27, 0
      %p132 = por %p130, %p131
      %p133 = scmp.ne.s32.totalorder %s122, %s125
      %p134 = scmp.eq.s32.totalorder %s32, 3
      %p135 = por %p133, %p134
      %p136 = scmp.ne.s32.totalorder %s125, %s126
      %p137 = scmp.eq.s32.totalorder %s32, 0
      %p138 = por %p136, %p137
      %p139 = scmp.ne.s32.totalorder %s125, %s126
      %p140 = scmp.eq.s32.totalorder %s33, 3
      %p141 = por %p139, %p140
      %p143 = scmp.ne.s32.totalorder %s126, %s142
      %p144 = scmp.eq.s32.totalorder %s33, 0
      %p145 = por %p143, %p144
      %s146 = ssub.s32 %s34, %s53
      %s147 = ssub.s32 %s35, %s49
      %s148 = sor.u32 %s146, %s147
      %p149 = scmp.eq.s32.totalorder %s148, 0
      %s151 = sadd.s32 %s150, 1
      %s152 = scalar_select %p149, %s150, %s151
      %p155 = pneg %p149
      %p156 = scmp.eq.s32.totalorder %s27, 3
      %p157 = por %p155, %p156
      %p158 = scmp.ne.s32.totalorder %s150, %s153
      %p159 = scmp.eq.s32.totalorder %s27, 0
      %p160 = por %p158, %p159
      %p161 = scmp.ne.s32.totalorder %s150, %s153
      %p162 = scmp.eq.s32.totalorder %s32, 3
      %p163 = por %p161, %p162
      %p164 = scmp.ne.s32.totalorder %s153, %s154
      %p165 = scmp.eq.s32.totalorder %s32, 0
      %p166 = por %p164, %p165
      %p167 = scmp.ne.s32.totalorder %s153, %s154
      %p168 = scmp.eq.s32.totalorder %s33, 3
      %p169 = por %p167, %p168
      %p171 = scmp.ne.s32.totalorder %s154, %s170
      %p172 = scmp.eq.s32.totalorder %s33, 0
      %p173 = por %p171, %p172
      %p174 = scmp.le.s32.totalorder 1, %s27
      %p175 = scmp.lt.s32.totalorder %s27, 5
      %p176 = pnand %p174, %p175
      %p177 = pneg %p176
      // Predicated region
      $region9: #{tpu_custom_call.1} parent=5 // pred_check
        _
      $region10: #{tpu_custom_call.1} parent=5 // pred_check_branch
        %179 = sbr.rel (%p176) target = $region12
      $region11: #{tpu_custom_call.1} parent=5 // pred_region
        %s180 = ssub.s32 %s27, 1
      $region12: #{tpu_custom_call.1} parent=5 // pred_fallthru
        _
      %p181 = scmp.lt.s32.totalorder %s27, 4
      // Predicated region
      $region13: #{tpu_custom_call.1} parent=5 // pred_check
        %p182 = pneg %p181
      $region14: #{tpu_custom_call.1} parent=5 // pred_check_branch
        %184 = sbr.rel (%p182) target = $region16
      $region15: #{tpu_custom_call.1} parent=5 // pred_region
        // Predicated region
        $region17: #{tpu_custom_call.1} parent=15 // pred_check
          %p185 = pneg %p72
        $region18: #{tpu_custom_call.1} parent=15 // pred_check_branch
          %187 = sbr.rel (%p185) target = $region20
        $region19: #{tpu_custom_call.1} parent=15 // pred_region
          %s188 = sand.u32 %s62, 1
          %s189 = scalar_lea.sflag [#allocation7], %s188
          %s190 = sand.u32 %s62, 1
          %s191 = smul.addr %s190, 4
          %s192 = scalar_lea.vmem [#allocation6], %s191
          %s193 = sld [smem:[#allocation5 + %s35]]
          %s194 = sadd.s32 %s34, %s36
          %s196 = ssub.s32 64, 64
          %197 = vsyncadd %s189, %s196
          %s198 = sadd.s32 %s194, %s193
          %s199 = smul.addr %s198, 32
          %s200 = scalar_lea.hbm %s1, %s199
          %s201 = sshll.u32 %s192, 4
          %s202 = int_to_ptr.vmem [resolvable:$true] %s201
          %207 = dma.hbm_to_vmem [thread:$0]  %s200, 64, %s202, %s189, 128, 32, 2
        $region20: #{tpu_custom_call.1} parent=15 // pred_fallthru
          _
        // Predicated region
        $region21: #{tpu_custom_call.1} parent=15 // pred_check
          %p208 = pneg %p104
        $region22: #{tpu_custom_call.1} parent=15 // pred_check_branch
          %210 = sbr.rel (%p208) target = $region24
        $region23: #{tpu_custom_call.1} parent=15 // pred_region
          %s211 = sand.u32 %s94, 1
          %s212 = scalar_lea.sflag [#allocation10], %s211
          %s213 = sand.u32 %s94, 1
          %s214 = smul.addr %s213, 4
          %s215 = scalar_lea.vmem [#allocation9], %s214
          %s216 = sld [smem:[#allocation5 + %s35]]
          %s217 = sadd.s32 %s34, %s36
          %s219 = ssub.s32 64, 64
          %220 = vsyncadd %s212, %s219
          %s221 = sadd.s32 %s217, %s216
          %s222 = smul.addr %s221, 32
          %s223 = scalar_lea.hbm %s2, %s222
          %s224 = sshll.u32 %s215, 4
          %s225 = int_to_ptr.vmem [resolvable:$true] %s224
          %230 = dma.hbm_to_vmem [thread:$0]  %s223, 64, %s225, %s212, 128, 32, 2
        $region24: #{tpu_custom_call.1} parent=15 // pred_fallthru
          _
      $region16: #{tpu_custom_call.1} parent=5 // pred_fallthru
        _
      %p231 = scmp.le.s32.totalorder 1, %s27
      %p232 = scmp.lt.s32.totalorder %s27, 5
      %p233 = pnand %p231, %p232
      %p234 = pneg %p233
      // Predicated region
      $region25: #{tpu_custom_call.1} parent=5 // pred_check
        _
      $region26: #{tpu_custom_call.1} parent=5 // pred_check_branch
        %236 = sbr.rel (%p233) target = $region28
      $region27: #{tpu_custom_call.1} parent=5 // pred_region
        %s237 = ssub.s32 %s27, 1
        %s238 = sand.u32 %s65, 1
        %s239 = scalar_lea.sflag [#allocation7], %s238
        %s240 = sand.u32 %s65, 1
        %s241 = smul.addr %s240, 4
        %s242 = scalar_lea.vmem [#allocation6], %s241
        // Predicated region
        $region29: #{tpu_custom_call.1} parent=27 // pred_check
          %p243 = pneg %p78
        $region30: #{tpu_custom_call.1} parent=27 // pred_check_branch
          %245 = sbr.rel (%p243) target = $region32
        $region31: #{tpu_custom_call.1} parent=27 // pred_region
          %246 = dma.done %s239, 64
        $region32: #{tpu_custom_call.1} parent=27 // pred_fallthru
          _
        %s247 = sand.u32 %s97, 1
        %s248 = scalar_lea.sflag [#allocation10], %s247
        %s249 = sand.u32 %s97, 1
        %s250 = smul.addr %s249, 4
        %s251 = scalar_lea.vmem [#allocation9], %s250
        // Predicated region
        $region33: #{tpu_custom_call.1} parent=27 // pred_check
          %p252 = pneg %p110
        $region34: #{tpu_custom_call.1} parent=27 // pred_check_branch
          %254 = sbr.rel (%p252) target = $region36
        $region35: #{tpu_custom_call.1} parent=27 // pred_region
          %255 = dma.done %s248, 64
        $region36: #{tpu_custom_call.1} parent=27 // pred_fallthru
          _
        %s256 = sand.u32 %s65, 1
        %s257 = scalar_lea.sflag [#allocation7], %s256
        %s258 = sand.u32 %s65, 1
        %s259 = smul.addr %s258, 4
        %s260 = scalar_lea.vmem [#allocation6], %s259
        %p261 = pneg %p78
        %p262 = pneg %p75
        %s263 = sand.u32 %s97, 1
        %s264 = scalar_lea.sflag [#allocation10], %s263
        %s265 = sand.u32 %s97, 1
        %s266 = smul.addr %s265, 4
        %s267 = scalar_lea.vmem [#allocation9], %s266
        %p268 = pneg %p110
        %p269 = pneg %p107
        %p270 = pneg %p138
        %p271 = pneg %p135
        %s272 = sand.u32 %s125, 1
        %s273 = scalar_lea.sflag [#allocation8], %s272
        %s274 = sand.u32 %s125, 1
        %s275 = scalar_lea.vmem [#allocation11], %s274
        %p276 = pneg %p166
        %p277 = pneg %p163
        %s278 = sand.u32 %s153, 1
        %s279 = scalar_lea.sflag [#allocation13], %s278
        %s280 = sand.u32 %s153, 1
        %s281 = scalar_lea.vmem [#allocation12], %s280
        %s282 = sld [smem:[#allocation5 + %s38]]
        %s283 = sadd.s32 %s37, %s39
        %s284 = sld [smem:[#allocation5 + %s38]]
        %s285 = sadd.s32 %s37, %s39
        %p286 = scmp.eq.s32.totalorder %s39, 0
        // Predicated region
        $region37: #{tpu_custom_call.1} parent=27 // pred_check
          %p287 = pneg %p286
        $region38: #{tpu_custom_call.1} parent=27 // pred_check_branch
          %289 = sbr.rel (%p287) target = $region40
        $region39: #{tpu_custom_call.1} parent=27 // pred_region
          %290 = vst [vmem:[#allocation2] sm:$0x1] 0.0
          %291 = vst [vmem:[#allocation3] sm:$0x1] 0.0
        $region40: #{tpu_custom_call.1} parent=27 // pred_fallthru
          _
        %v292 = vld [vmem:[%s242] sm:$0x3]
        %v293 = vld [vmem:[%s242 + $0x2] sm:$0x3]
        %v294 = vld [vmem:[%s251] sm:$0x3]
        %v295 = vld [vmem:[%s251 + $0x2] sm:$0x3]
        %v296 = vmul.f32 %v292, %v294
        %v297 = vmul.f32 %v293, %v295
        %v298 = vadd.f32 %v292, %v294
        %v299 = vadd.f32 %v293, %v295
        %v300 = vld [vmem:[#allocation2] sm:$0x1]
        %vm301 = vcmask 1041408
        %v302 = vsel %vm301, %v296, 0.0
        %v303 = vsel %vm301, %v297, 0.0
        %v304 = vadd.f32 %v302, %v303
        %v305 = vsel %vm301, %v304, 0.0
        %v306 = vrot.slane %v305, 4
        %v307 = vadd.f32 %v305, %v306
        %v308 = vrot.slane %v307, 2
        %v309 = vadd.f32 %v307, %v308
        %v310 = vrot.slane %v309, 1
        %v311 = vadd.f32 %v309, %v310
        %v312 = vadd.f32 %v300, %v311
        %313 = vst [vmem:[#allocation2] sm:$0x1] %v312
        %v314 = vld [vmem:[#allocation3] sm:$0x1]
        %v315 = vsel %vm301, %v298, 0.0
        %v316 = vsel %vm301, %v299, 0.0
        %v317 = vadd.f32 %v315, %v316
        %v318 = vsel %vm301, %v317, 0.0
        %v319 = vrot.slane %v318, 4
        %v320 = vadd.f32 %v318, %v319
        %v321 = vrot.slane %v320, 2
        %v322 = vadd.f32 %v320, %v321
        %v323 = vrot.slane %v322, 1
        %v324 = vadd.f32 %v322, %v323
        %v325 = vadd.f32 %v314, %v324
        %326 = vst [vmem:[#allocation3] sm:$0x1] %v325
        // Predicated region
        $region41: #{tpu_custom_call.1} parent=27 // pred_check
          %p327 = pneg %p286
        $region42: #{tpu_custom_call.1} parent=27 // pred_check_branch
          %329 = sbr.rel (%p327) target = $region44
        $region43: #{tpu_custom_call.1} parent=27 // pred_region
          %v330 = vld [vmem:[#allocation2] sm:$0x1]
          %vm331 = vcmask 1040384
          %v332 = vsel %vm331, %v330, 0.0
          %333 = vadd.xlane.f32.xlu0 %v332
          %v334 = vpop.xlane.xlu0 %333
          %v335 = vrot.slane %v334, 4
          %v336 = vadd.f32 %v334, %v335
          %v337 = vrot.slane %v336, 2
          %v338 = vadd.f32 %v336, %v337
          %v339 = vrot.slane %v338, 1
          %v340 = vadd.f32 %v338, %v339
          %s341 = vtos %v340
          %v342 = vld [vmem:[#allocation3] sm:$0x1]
          %v343 = vsel %vm331, %v342, 0.0
          %344 = vadd.xlane.f32.xlu0 %v343
          %v345 = vpop.xlane.xlu0 %344
          %v346 = vrot.slane %v345, 4
          %v347 = vadd.f32 %v345, %v346
          %v348 = vrot.slane %v347, 2
          %v349 = vadd.f32 %v347, %v348
          %v350 = vrot.slane %v349, 1
          %v351 = vadd.f32 %v349, %v350
          %s352 = vtos %v351
          %v353 = vstv %s341
          %354 = vst [vmem:[%s275] sm:$0x1] %v353
          %v355 = vstv %s352
          %356 = vst [vmem:[%s281] sm:$0x1] %v355
        $region44: #{tpu_custom_call.1} parent=27 // pred_fallthru
          _
        %s357 = sand.u32 %s125, 1
        %s358 = scalar_lea.sflag [#allocation8], %s357
        %s359 = sand.u32 %s125, 1
        %s360 = scalar_lea.vmem [#allocation11], %s359
        %s361 = sand.u32 %s153, 1
        %s362 = scalar_lea.sflag [#allocation13], %s361
        %s363 = sand.u32 %s153, 1
        %s364 = scalar_lea.vmem [#allocation12], %s363
        // Predicated region
        $region45: #{tpu_custom_call.1} parent=27 // pred_check
          %p365 = pneg %p135
        $region46: #{tpu_custom_call.1} parent=27 // pred_check_branch
          %367 = sbr.rel (%p365) target = $region48
        $region47: #{tpu_custom_call.1} parent=27 // pred_region
          %s369 = ssub.s32 16, 16
          %370 = vsyncadd %s358, %s369
          %s371 = smul.addr %s37, 4
          %s372 = sadd.s32 %s38, %s371
          %s373 = smul.addr %s372, 16
          %s374 = scalar_lea.hbm %s3, %s373
          %s376 = sshll.u32 %s360, 4
          %s377 = int_to_ptr.vmem [resolvable:$true] %s376
          %379 = dma.vmem_to_hbm [thread:$0]  %s377, 16, %s374, %s358
        $region48: #{tpu_custom_call.1} parent=27 // pred_fallthru
          _
        // Predicated region
        $region49: #{tpu_custom_call.1} parent=27 // pred_check
          %p380 = pneg %p163
        $region50: #{tpu_custom_call.1} parent=27 // pred_check_branch
          %382 = sbr.rel (%p380) target = $region52
        $region51: #{tpu_custom_call.1} parent=27 // pred_region
          %s384 = ssub.s32 16, 16
          %385 = vsyncadd %s362, %s384
          %s386 = smul.addr %s37, 4
          %s387 = sadd.s32 %s38, %s386
          %s388 = smul.addr %s387, 16
          %s389 = scalar_lea.hbm %s4, %s388
          %s391 = sshll.u32 %s364, 4
          %s392 = int_to_ptr.vmem [resolvable:$true] %s391
          %394 = dma.vmem_to_hbm [thread:$0]  %s392, 16, %s389, %s362
        $region52: #{tpu_custom_call.1} parent=27 // pred_fallthru
          _
      $region28: #{tpu_custom_call.1} parent=5 // pred_fallthru
        _
      %p395 = scmp.le.s32.totalorder 2, %s27
      // Predicated region
      $region53: #{tpu_custom_call.1} parent=5 // pred_check
        %p396 = pneg %p395
      $region54: #{tpu_custom_call.1} parent=5 // pred_check_branch
        %398 = sbr.rel (%p396) target = $region56
      $region55: #{tpu_custom_call.1} parent=5 // pred_region
        %s399 = ssub.s32 %s27, 2
        // Predicated region
        $region57: #{tpu_custom_call.1} parent=55 // pred_check
          %p400 = pneg %p141
        $region58: #{tpu_custom_call.1} parent=55 // pred_check_branch
          %402 = sbr.rel (%p400) target = $region60
        $region59: #{tpu_custom_call.1} parent=55 // pred_region
          %s403 = sand.u32 %s126, 1
          %s404 = scalar_lea.sflag [#allocation8], %s403
          %s405 = sand.u32 %s126, 1
          %s406 = scalar_lea.vmem [#allocation11], %s405
          %407 = dma.done %s404, 16
        $region60: #{tpu_custom_call.1} parent=55 // pred_fallthru
          _
        // Predicated region
        $region61: #{tpu_custom_call.1} parent=55 // pred_check
          %p408 = pneg %p169
        $region62: #{tpu_custom_call.1} parent=55 // pred_check_branch
          %410 = sbr.rel (%p408) target = $region64
        $region63: #{tpu_custom_call.1} parent=55 // pred_region
          %s411 = sand.u32 %s154, 1
          %s412 = scalar_lea.sflag [#allocation13], %s411
          %s413 = sand.u32 %s154, 1
          %s414 = scalar_lea.vmem [#allocation12], %s413
          %415 = dma.done %s412, 16
        $region64: #{tpu_custom_call.1} parent=55 // pred_fallthru
          _
      $region56: #{tpu_custom_call.1} parent=5 // pred_fallthru
        _
    $region6: #{tpu_custom_call.1} parent=1 // loop_footer
      %s31 = sadd.s32 1, %s27
    $region7: #{tpu_custom_call.1} parent=1 // loop_footer_branch
      %26 = sbr.rel target = $region3
    $region8: #{tpu_custom_call.1} parent=1 // loop_exit
      _
    %416 = vsyncpa [#allocation7], 1
    %s417 = scalar_lea.sflag [#allocation7], 1
    %418 = vsyncpa %s417, 1
    %419 = vsyncpa [#allocation10], 1
    %s420 = scalar_lea.sflag [#allocation10], 1
    %421 = vsyncpa %s420, 1
    %422 = vsyncpa [#allocation8], 1
    %s423 = scalar_lea.sflag [#allocation8], 1
    %424 = vsyncpa %s423, 1
    %425 = vsyncpa [#allocation13], 1
    %s426 = scalar_lea.sflag [#allocation13], 1
    %427 = vsyncpa %s426, 1

</llo_original>
